<compile_context>
chip_gen: v5e
topology: v5e:2x2
jax: 0.10.0
libtpu: 0.0.40
codegen_flags: <defaults>
</compile_context>

<pallas_src>
import jax
import jax.numpy as jnp
from jax import lax
from jax.experimental import pallas as pl
from jax.experimental.pallas import tpu as pltpu

LANE = 128
SUBLANE = 8
ROW_ALIGN = 16           # covers bf16/f16 (16,128) min tile as well as f32 (8,128)
COLS = 4 * LANE          # 512-wide lane-dense slab -> wide unmasked vector loads
MAX_TILE_ROWS = 2048     # 2048 x 512 x 4B = 4 MiB per f32 input tile
NUM_SHARDS = 2           # "parallel" axis: 2 TCs on v7x, trivial outer loop elsewhere
_NATIVE_DTYPES = ("float32", "bfloat16", "float16")


# ---------------------------------------------------------------------------
# Kernel: per-shard accumulation of sum(x*x), sum(t*t), sum(x*t); the last grid
# step of each shard writes the three partial sums into that shard's output row.
# ---------------------------------------------------------------------------
def _partial_sums_kernel(x_ref, t_ref, o_ref, acc_xx, acc_tt, acc_xt):
    @pl.when(pl.program_id(1) == 0)
    def _init():
        acc_xx[...] = jnp.zeros_like(acc_xx)
        acc_tt[...] = jnp.zeros_like(acc_tt)
        acc_xt[...] = jnp.zeros_like(acc_xt)

    # Upcast in-vreg (free vs. a wrapper-side astype HBM round trip).
    x = x_ref[...].astype(jnp.float32)
    t = t_ref[...].astype(jnp.float32)
    tile_rows, cols = x.shape
    r = tile_rows // SUBLANE

    # Partial reduce over the leading (non-layout) axis: cheap VPU adds, no
    # cross-lane/XLU work on the hot path.
    acc_xx[...] += (x * x).reshape(r, SUBLANE, cols).sum(axis=0)
    acc_tt[...] += (t * t).reshape(r, SUBLANE, cols).sum(axis=0)
    acc_xt[...] += (x * t).reshape(r, SUBLANE, cols).sum(axis=0)

    @pl.when(pl.program_id(1) == pl.num_programs(1) - 1)
    def _finalize():
        sxx = jnp.sum(acc_xx[...])
        stt = jnp.sum(acc_tt[...])
        sxt = jnp.sum(acc_xt[...])
        lane = lax.broadcasted_iota(jnp.int32, o_ref.shape, dimension=2)
        o_ref[...] = jnp.where(lane == 0, sxx,
                     jnp.where(lane == 1, stt,
                     jnp.where(lane == 2, sxt, jnp.float32(0.0))))


# ---------------------------------------------------------------------------
# Tiling plan / input prep
# ---------------------------------------------------------------------------
def _round_up(v, m):
    return ((v + m - 1) // m) * m


def _plan_tiles(n_elems, max_tile_rows):
    rows = max(1, -(-n_elems // COLS))                       # rows needed
    grid_steps = _round_up(max(1, -(-rows // max_tile_rows)), NUM_SHARDS)
    tile_rows = _round_up(-(-rows // grid_steps), ROW_ALIGN)
    total_rows = grid_steps * tile_rows                      # minimal exact cover
    return tile_rows, grid_steps, total_rows


def _prepare(arr, total_rows):
    """Flatten to a (total_rows, COLS) slab in the input's native float dtype."""
    flat = arr.reshape(-1)
    if flat.dtype.name not in _NATIVE_DTYPES:
        flat = flat.astype(jnp.float32)
    n = flat.shape[0]
    padded = total_rows * COLS
    if padded != n:   # skip the extra HBM copy when already tile-aligned
        flat = jnp.pad(flat, (0, padded - n))
    return flat.reshape(total_rows, COLS)


# ---------------------------------------------------------------------------
# Public wrapper: returns (input unchanged, loss) matching ContentLoss.forward
# ---------------------------------------------------------------------------
def content_loss(x, target, weight, max_tile_rows=MAX_TILE_ROWS):
    n = x.size
    assert n == target.size, "input and target must have the same number of elements"

    tile_rows, grid_steps, total_rows = _plan_tiles(n, max_tile_rows)
    tiles_per_shard = grid_steps // NUM_SHARDS

    x2d = _prepare(x, total_rows)
    t2d = _prepare(target, total_rows)
    bytes_streamed = total_rows * COLS * (x2d.dtype.itemsize + t2d.dtype.itemsize)

    partials = pl.pallas_call(
        _partial_sums_kernel,
        out_shape=jax.ShapeDtypeStruct((NUM_SHARDS, SUBLANE, LANE), jnp.float32),
        grid=(NUM_SHARDS, tiles_per_shard),
        in_specs=[
            pl.BlockSpec((tile_rows, COLS),
                         lambda c, i: (c * tiles_per_shard + i, 0)),   # x tile
            pl.BlockSpec((tile_rows, COLS),
                         lambda c, i: (c * tiles_per_shard + i, 0)),   # t tile
        ],
        out_specs=pl.BlockSpec((1, SUBLANE, LANE), lambda c, i: (c, 0, 0)),
        scratch_shapes=[
            pltpu.VMEM((SUBLANE, COLS), jnp.float32),   # acc sum(x*x)
            pltpu.VMEM((SUBLANE, COLS), jnp.float32),   # acc sum(t*t)
            pltpu.VMEM((SUBLANE, COLS), jnp.float32),   # acc sum(x*t)
        ],
        compiler_params=pltpu.CompilerParams(
            dimension_semantics=("parallel", "arbitrary"),
            vmem_limit_bytes=32 * 1024 * 1024,
        ),
        cost_estimate=pl.CostEstimate(
            flops=8 * n, transcendentals=0, bytes_accessed=int(bytes_streamed)),
    )(x2d, t2d)

    # Tiny finalize in the wrapper (combines the per-shard partials).
    sxx = jnp.sum(partials[:, 0, 0])
    stt = jnp.sum(partials[:, 0, 1])
    sxt = jnp.sum(partials[:, 0, 2])
    # mean((x/||x|| - t/||t||)^2) == (2 - 2*<x,t>/(||x||*||t||)) / n
    loss = (jnp.float32(weight) / jnp.float32(n)) * (
        jnp.float32(2.0) - 2.0 * sxt * lax.rsqrt(sxx) * lax.rsqrt(stt))
    return x, loss


def _reference_loss(x, target, weight):
    xf = x.astype(jnp.float32).reshape(-1)
    tf = target.astype(jnp.float32).reshape(-1)
    xn = xf / jnp.linalg.norm(xf)
    tn = tf / jnp.linalg.norm(tf)
    return weight * jnp.mean((xn - tn) ** 2)


if __name__ == "__main__":
    key = jax.random.PRNGKey(0)
    weight = 0.75
    k1, k2, k3, k4, k5, k6, k7, k8 = jax.random.split(key, 8)

    # Case 1: standard small NCHW feature map, f32.
    x = jax.random.normal(k1, (2, 4, 16, 16), dtype=jnp.float32)
    t = jax.random.normal(k2, (2, 4, 16, 16), dtype=jnp.float32)
    out, loss = content_loss(x, t, weight)
    out = jax.block_until_ready(out)
    loss = jax.block_until_ready(loss)
    assert out.shape == x.shape and jnp.allclose(out, x)          # forward returns input
    ref = _reference_loss(x, t, weight)
    assert jnp.allclose(loss, ref, rtol=1e-4, atol=1e-6), (loss, ref)

    # Case 2: ragged element count (exercises the minimal zero-padding path).
    x2 = jax.random.normal(k3, (1, 3, 13, 17), dtype=jnp.float32)
    t2 = jax.random.normal(k4, (1, 3, 13, 17), dtype=jnp.float32)
    _, loss2 = content_loss(x2, t2, weight)
    loss2 = jax.block_until_ready(loss2)
    ref2 = _reference_loss(x2, t2, weight)
    assert jnp.allclose(loss2, ref2, rtol=1e-4, atol=1e-6), (loss2, ref2)

    # Case 3: bf16 feature maps streamed natively (no wrapper upcast copy, no pad).
    x3 = jax.random.normal(k5, (2, 8, 32, 32), dtype=jnp.bfloat16)
    t3 = jax.random.normal(k6, (2, 8, 32, 32), dtype=jnp.bfloat16)
    _, loss3 = content_loss(x3, t3, weight)
    loss3 = jax.block_until_ready(loss3)
    ref3 = _reference_loss(x3, t3, weight)
    assert jnp.allclose(loss3, ref3, rtol=1e-4, atol=1e-6), (loss3, ref3)

    # Case 4: small max_tile_rows to exercise multi-step accumulation on both shards.
    x4 = jax.random.normal(k7, (2, 16, 32, 32), dtype=jnp.float32)
    t4 = jax.random.normal(k8, (2, 16, 32, 32), dtype=jnp.float32)
    _, loss4 = content_loss(x4, t4, weight, max_tile_rows=16)
    loss4 = jax.block_until_ready(loss4)
    ref4 = _reference_loss(x4, t4, weight)
    assert jnp.allclose(loss4, ref4, rtol=1e-4, atol=1e-6), (loss4, ref4)

    print("KERNEL_OK")
</pallas_src>

<mosaic_0001>
module attributes {stable_mosaic.version = 11 : i64} {
  func.func @_partial_sums_kernel(%arg0: i32, %arg1: i32, %arg2: memref<16x512xf32, #tpu.memory_space<vmem>>, %arg3: memref<16x512xf32, #tpu.memory_space<vmem>>, %arg4: memref<1x8x128xf32, #tpu.memory_space<vmem>>, %arg5: memref<8x512xf32, #tpu.memory_space<vmem>>, %arg6: memref<8x512xf32, #tpu.memory_space<vmem>>, %arg7: memref<8x512xf32, #tpu.memory_space<vmem>>) attributes {dimension_semantics = [#tpu.dimension_semantics<parallel>, #tpu.dimension_semantics<arbitrary>], iteration_bounds = array<i64: 2, 1>, scalar_prefetch = 0 : i64, scratch_operands = 3 : i64, tpu.core_type = #tpu.core_type<tc>, window_params = [{transform_indices = @transform_0, window_bounds = array<i64: 16, 512>}, {transform_indices = @transform_1, window_bounds = array<i64: 16, 512>}, {transform_indices = @transform_2, window_bounds = array<i64: 1, 8, 128>}]} {
    %c0_i32 = arith.constant 0 : i32
    %0 = arith.cmpi eq, %arg1, %c0_i32 : i32
    %1 = arith.extui %0 : i1 to i32
    %c0_i32_0 = arith.constant 0 : i32
    %2 = arith.cmpi ne, %1, %c0_i32_0 : i32
    scf.if %2 {
      %cst_20 = arith.constant 0.000000e+00 : f32
      %26 = vector.broadcast %cst_20 : f32 to vector<8x512xf32>
      %c0_21 = arith.constant 0 : index
      %c0_22 = arith.constant 0 : index
      %27 = vector.load %arg5[%c0_21, %c0_22] : memref<8x512xf32, #tpu.memory_space<vmem>>, vector<8x512xf32>
      tpu.vector_store %arg5[%c0_21, %c0_22], %26 {strides = array<i32>} : memref<8x512xf32, #tpu.memory_space<vmem>>, vector<8x512xf32>,
      %cst_23 = arith.constant 0.000000e+00 : f32
      %28 = vector.broadcast %cst_23 : f32 to vector<8x512xf32>
      %c0_24 = arith.constant 0 : index
      %c0_25 = arith.constant 0 : index
      %29 = vector.load %arg6[%c0_24, %c0_25] : memref<8x512xf32, #tpu.memory_space<vmem>>, vector<8x512xf32>
      tpu.vector_store %arg6[%c0_24, %c0_25], %28 {strides = array<i32>} : memref<8x512xf32, #tpu.memory_space<vmem>>, vector<8x512xf32>,
      %cst_26 = arith.constant 0.000000e+00 : f32
      %30 = vector.broadcast %cst_26 : f32 to vector<8x512xf32>
      %c0_27 = arith.constant 0 : index
      %c0_28 = arith.constant 0 : index
      %31 = vector.load %arg7[%c0_27, %c0_28] : memref<8x512xf32, #tpu.memory_space<vmem>>, vector<8x512xf32>
      tpu.vector_store %arg7[%c0_27, %c0_28], %30 {strides = array<i32>} : memref<8x512xf32, #tpu.memory_space<vmem>>, vector<8x512xf32>,
    } else {
    }
    %c0 = arith.constant 0 : index
    %c0_1 = arith.constant 0 : index
    %3 = vector.load %arg2[%c0, %c0_1] : memref<16x512xf32, #tpu.memory_space<vmem>>, vector<16x512xf32>
    %c0_2 = arith.constant 0 : index
    %c0_3 = arith.constant 0 : index
    %4 = vector.load %arg3[%c0_2, %c0_3] : memref<16x512xf32, #tpu.memory_space<vmem>>, vector<16x512xf32>
    %c0_4 = arith.constant 0 : index
    %c0_5 = arith.constant 0 : index
    %5 = vector.load %arg5[%c0_4, %c0_5] : memref<8x512xf32, #tpu.memory_space<vmem>>, vector<8x512xf32>
    %6 = arith.mulf %3, %3 : vector<16x512xf32>
    %7 = vector.shape_cast %6 : vector<16x512xf32> to vector<2x8x512xf32>
    %cst = arith.constant dense<0.000000e+00> : vector<8x512xf32>
    %8 = vector.multi_reduction <add>, %7, %cst [0] : vector<2x8x512xf32> to vector<8x512xf32>
    %9 = arith.addf %5, %8 : vector<8x512xf32>
    %c0_6 = arith.constant 0 : index
    %c0_7 = arith.constant 0 : index
    %10 = vector.load %arg5[%c0_6, %c0_7] : memref<8x512xf32, #tpu.memory_space<vmem>>, vector<8x512xf32>
    tpu.vector_store %arg5[%c0_6, %c0_7], %9 {strides = array<i32>} : memref<8x512xf32, #tpu.memory_space<vmem>>, vector<8x512xf32>,
    %c0_8 = arith.constant 0 : index
    %c0_9 = arith.constant 0 : index
    %11 = vector.load %arg6[%c0_8, %c0_9] : memref<8x512xf32, #tpu.memory_space<vmem>>, vector<8x512xf32>
    %12 = arith.mulf %4, %4 : vector<16x512xf32>
    %13 = vector.shape_cast %12 : vector<16x512xf32> to vector<2x8x512xf32>
    %cst_10 = arith.constant dense<0.000000e+00> : vector<8x512xf32>
    %14 = vector.multi_reduction <add>, %13, %cst_10 [0] : vector<2x8x512xf32> to vector<8x512xf32>
    %15 = arith.addf %11, %14 : vector<8x512xf32>
    %c0_11 = arith.constant 0 : index
    %c0_12 = arith.constant 0 : index
    %16 = vector.load %arg6[%c0_11, %c0_12] : memref<8x512xf32, #tpu.memory_space<vmem>>, vector<8x512xf32>
    tpu.vector_store %arg6[%c0_11, %c0_12], %15 {strides = array<i32>} : memref<8x512xf32, #tpu.memory_space<vmem>>, vector<8x512xf32>,
    %c0_13 = arith.constant 0 : index
    %c0_14 = arith.constant 0 : index
    %17 = vector.load %arg7[%c0_13, %c0_14] : memref<8x512xf32, #tpu.memory_space<vmem>>, vector<8x512xf32>
    %18 = arith.mulf %3, %4 : vector<16x512xf32>
    %19 = vector.shape_cast %18 : vector<16x512xf32> to vector<2x8x512xf32>
    %cst_15 = arith.constant dense<0.000000e+00> : vector<8x512xf32>
    %20 = vector.multi_reduction <add>, %19, %cst_15 [0] : vector<2x8x512xf32> to vector<8x512xf32>
    %21 = arith.addf %17, %20 : vector<8x512xf32>
    %c0_16 = arith.constant 0 : index
    %c0_17 = arith.constant 0 : index
    %22 = vector.load %arg7[%c0_16, %c0_17] : memref<8x512xf32, #tpu.memory_space<vmem>>, vector<8x512xf32>
    tpu.vector_store %arg7[%c0_16, %c0_17], %21 {strides = array<i32>} : memref<8x512xf32, #tpu.memory_space<vmem>>, vector<8x512xf32>,
    %c0_i32_18 = arith.constant 0 : i32
    %23 = arith.cmpi eq, %arg1, %c0_i32_18 : i32
    %24 = arith.extui %23 : i1 to i32
    %c0_i32_19 = arith.constant 0 : i32
    %25 = arith.cmpi ne, %24, %c0_i32_19 : i32
    scf.if %25 {
      %c0_20 = arith.constant 0 : index
      %c0_21 = arith.constant 0 : index
      %26 = vector.load %arg5[%c0_20, %c0_21] : memref<8x512xf32, #tpu.memory_space<vmem>>, vector<8x512xf32>
      %27 = vector.shape_cast %26 : vector<8x512xf32> to vector<1x8x512xf32>
      %cst_22 = arith.constant dense<0.000000e+00> : vector<1xf32>
      %28 = vector.multi_reduction <add>, %27, %cst_22 [1, 2] : vector<1x8x512xf32> to vector<1xf32>
      %29 = vector.shape_cast %28 : vector<1xf32> to vector<1x1x1xf32>
      %30 = vector.extract %29[0, 0, 0] : f32 from vector<1x1x1xf32>
      %c0_23 = arith.constant 0 : index
      %c0_24 = arith.constant 0 : index
      %31 = vector.load %arg6[%c0_23, %c0_24] : memref<8x512xf32, #tpu.memory_space<vmem>>, vector<8x512xf32>
      %32 = vector.shape_cast %31 : vector<8x512xf32> to vector<1x8x512xf32>
      %cst_25 = arith.constant dense<0.000000e+00> : vector<1xf32>
      %33 = vector.multi_reduction <add>, %32, %cst_25 [1, 2] : vector<1x8x512xf32> to vector<1xf32>
      %34 = vector.shape_cast %33 : vector<1xf32> to vector<1x1x1xf32>
      %35 = vector.extract %34[0, 0, 0] : f32 from vector<1x1x1xf32>
      %c0_26 = arith.constant 0 : index
      %c0_27 = arith.constant 0 : index
      %36 = vector.load %arg7[%c0_26, %c0_27] : memref<8x512xf32, #tpu.memory_space<vmem>>, vector<8x512xf32>
      %37 = vector.shape_cast %36 : vector<8x512xf32> to vector<1x8x512xf32>
      %cst_28 = arith.constant dense<0.000000e+00> : vector<1xf32>
      %38 = vector.multi_reduction <add>, %37, %cst_28 [1, 2] : vector<1x8x512xf32> to vector<1xf32>
      %39 = vector.shape_cast %38 : vector<1xf32> to vector<1x1x1xf32>
      %40 = vector.extract %39[0, 0, 0] : f32 from vector<1x1x1xf32>
      %41 = tpu.iota {dimensions = array<i32: 2>} : vector<1x8x128xi32>
      %c0_i32_29 = arith.constant 0 : i32
      %42 = vector.broadcast %c0_i32_29 : i32 to vector<1x8x128xi32>
      %43 = arith.cmpi eq, %41, %42 : vector<1x8x128xi32>
      %c1_i32 = arith.constant 1 : i32
      %44 = vector.broadcast %c1_i32 : i32 to vector<1x8x128xi32>
      %45 = arith.cmpi eq, %41, %44 : vector<1x8x128xi32>
      %c2_i32 = arith.constant 2 : i32
      %46 = vector.broadcast %c2_i32 : i32 to vector<1x8x128xi32>
      %47 = arith.cmpi eq, %41, %46 : vector<1x8x128xi32>
      %cst_30 = arith.constant 0.000000e+00 : f32
      %48 = vector.broadcast %40 : f32 to vector<1x8x128xf32>
      %49 = vector.broadcast %cst_30 : f32 to vector<1x8x128xf32>
      %50 = arith.select %47, %48, %49 : vector<1x8x128xi1>, vector<1x8x128xf32>
      %51 = vector.broadcast %35 : f32 to vector<1x8x128xf32>
      %52 = arith.select %45, %51, %50 : vector<1x8x128xi1>, vector<1x8x128xf32>
      %53 = vector.broadcast %30 : f32 to vector<1x8x128xf32>
      %54 = arith.select %43, %53, %52 : vector<1x8x128xi1>, vector<1x8x128xf32>
      %c0_31 = arith.constant 0 : index
      %c0_32 = arith.constant 0 : index
      %c0_33 = arith.constant 0 : index
      %55 = vector.load %arg4[%c0_31, %c0_32, %c0_33] : memref<1x8x128xf32, #tpu.memory_space<vmem>>, vector<1x8x128xf32>
      tpu.vector_store %arg4[%c0_31, %c0_32, %c0_33], %54 {strides = array<i32>} : memref<1x8x128xf32, #tpu.memory_space<vmem>>, vector<1x8x128xf32>,
    } else {
    }
    return
  }
  func.func @transform_0(%arg0: i32, %arg1: i32) -> (i32, i32) {
    %c1_i32 = arith.constant 1 : i32
    %0 = arith.muli %arg0, %c1_i32 : i32
    %1 = arith.addi %0, %arg1 : i32
    %c0_i32 = arith.constant 0 : i32
    %c0_i32_0 = arith.constant 0 : i32
    return %1, %c0_i32 : i32, i32
  }
  func.func @transform_1(%arg0: i32, %arg1: i32) -> (i32, i32) {
    %c1_i32 = arith.constant 1 : i32
    %0 = arith.muli %arg0, %c1_i32 : i32
    %1 = arith.addi %0, %arg1 : i32
    %c0_i32 = arith.constant 0 : i32
    %c0_i32_0 = arith.constant 0 : i32
    return %1, %c0_i32 : i32, i32
  }
  func.func @transform_2(%arg0: i32, %arg1: i32) -> (i32, i32, i32) {
    %c0_i32 = arith.constant 0 : i32
    %c0_i32_0 = arith.constant 0 : i32
    %c0_i32_1 = arith.constant 0 : i32
    return %arg0, %c0_i32, %c0_i32_0 : i32, i32, i32
  }
}

</mosaic_0001>

<llo_original>
// kernel: tpu_custom_call.1
$region0: #{tpu_custom_call.1}
  #allocation0 [shape = 'u32[]', space=smem, size = 0x4, offset = 0x4, fixed_abs, tag = 'smem constant byte address 0x4 - core index']
  #allocation1 [shape = 'u32[72,128]{1,0:T(1,128)}', space=vmem, size = 0x9000, scoped, tag = 'internal scratch']
  #allocation2 [shape = 'f32[8,512]{1,0:T(8,128)}', space=vmem, size = 0x4000, scoped, tag = 'scratch operand']
  #allocation3 [shape = 'f32[8,512]{1,0:T(8,128)}', space=vmem, size = 0x4000, scoped, tag = 'scratch operand']
  #allocation4 [shape = 'f32[8,512]{1,0:T(8,128)}', space=vmem, size = 0x4000, scoped, tag = 'scratch operand']
  %s0 = inlined_call_operand.hbm [shape: f32[32,512], index: 0, kind: input, shape index: {}]
  %s1 = inlined_call_operand.hbm [shape: f32[32,512], index: 1, kind: input, shape index: {}]
  %s2 = inlined_call_operand.hbm [shape: f32[2,8,128], index: 2, kind: output, shape index: {}]
  %s3 = sld [smem:[#allocation0]]
  $region57: #{tpu_custom_call.1} parent=0
    _
  %s5 = ssub.s32 1, %s3
  %s6 = scalar_select 0, %s5, %s3
  $region1: #{tpu_custom_call.1} parent=0
    #allocation5 [shape = 'u8[65536]{0}', space=vmem, size = 0x10000, scoped, tag = 'input window, operand 0']
    #allocation6 [shape = 's32[2]{0}', space=sflag, size = 0x8, scoped, tag = 'scoped memory for tpu_custom_call.1']
    #allocation7 [shape = 's32[2]{0}', space=sflag, size = 0x8, scoped, tag = 'scoped memory for tpu_custom_call.1']
    #allocation8 [shape = 'u8[65536]{0}', space=vmem, size = 0x10000, scoped, tag = 'input window, operand 1']
    #allocation9 [shape = 's32[2]{0}', space=sflag, size = 0x8, scoped, tag = 'scoped memory for tpu_custom_call.1']
    #allocation10 [shape = 'u8[8192]{0}', space=vmem, size = 0x2000, scoped, tag = 'output window, operand 0']
    %7 = vsyncpa [#allocation6], 0
    %s8 = scalar_lea.sflag [#allocation6], 1
    %9 = vsyncpa %s8, 0
    %10 = vsyncpa [#allocation9], 0
    %s11 = scalar_lea.sflag [#allocation9], 1
    %12 = vsyncpa %s11, 0
    %13 = vsyncpa [#allocation7], 0
    %s14 = scalar_lea.sflag [#allocation7], 1
    %15 = vsyncpa %s14, 0
    loop: start=0, step=1, limit=4
    $region2: #{tpu_custom_call.1} parent=1 // loop_pre_header
      _
    $region3: #{tpu_custom_call.1} parent=1 // loop_header
      %s17 = sphi 0, %s21
      %p18 = scmp.ge.s32.totalorder %s17, 4
      %s24 = sphi 0, %s36
      %s25 = sphi 0, %s32
      %s26 = sphi 0, %s24
      %s27 = sphi 0, %s25
      %s28 = sphi 0, %s26
      %s29 = sphi 0, %s27
      %s41 = sphi 0, %s43
      %s44 = sphi 0, %s41
      %s45 = sphi 0, %s44
      %s61 = sphi 0, %s45
      %s69 = sphi 0, %s71
      %s72 = sphi 0, %s69
      %s73 = sphi 0, %s72
      %s89 = sphi 0, %s73
      %s95 = sphi 0, %s97
      %s98 = sphi 0, %s95
      %s99 = sphi 0, %s98
      %s115 = sphi 0, %s99
    $region4: #{tpu_custom_call.1} parent=1 // loop_header_branch
      %20 = sbr.rel (%p18) target = $region8
    $region5: #{tpu_custom_call.1} parent=1 // loop_body
      %s22 = ssub.s32 %s17, 1
      %s23 = ssub.s32 %s17, 2
      %s30 = sadd.s32 1, %s25
      %p31 = scmp.ge.s32.totalorder %s30, 1
      %s32 = scalar_select %p31, 0, %s30
      %s33 = sadd.s32 1, %s24
      %s34 = scalar_select %p31, %s33, %s24
      %p35 = scmp.ge.s32.totalorder %s34, 2
      %s36 = scalar_select %p35, 0, %s34
      %s37 = sadd.s32 %s24, %s25
      %s38 = sadd.s32 %s36, %s32
      %s39 = ssub.s32 %s37, %s38
      %p40 = scmp.eq.s32.totalorder %s39, 0
      %s42 = sadd.s32 %s41, 1
      %s43 = scalar_select %p40, %s41, %s42
      %p46 = pneg %p40
      %p47 = scmp.eq.s32.totalorder %s17, 1
      %p48 = por %p46, %p47
      %p49 = scmp.ne.s32.totalorder %s41, %s44
      %p50 = scmp.eq.s32.totalorder %s17, 0
      %p51 = por %p49, %p50
      %p52 = scmp.ne.s32.totalorder %s41, %s44
      %p53 = scmp.eq.s32.totalorder %s22, 1
      %p54 = por %p52, %p53
      %p55 = scmp.ne.s32.totalorder %s44, %s45
      %p56 = scmp.eq.s32.totalorder %s22, 0
      %p57 = por %p55, %p56
      %p58 = scmp.ne.s32.totalorder %s44, %s45
      %p59 = scmp.eq.s32.totalorder %s23, 1
      %p60 = por %p58, %p59
      %p62 = scmp.ne.s32.totalorder %s45, %s61
      %p63 = scmp.eq.s32.totalorder %s23, 0
      %p64 = por %p62, %p63
      %s65 = sadd.s32 %s24, %s25
      %s66 = sadd.s32 %s36, %s32
      %s67 = ssub.s32 %s65, %s66
      %p68 = scmp.eq.s32.totalorder %s67, 0
      %s70 = sadd.s32 %s69, 1
      %s71 = scalar_select %p68, %s69, %s70
      %p74 = pneg %p68
      %p75 = scmp.eq.s32.totalorder %s17, 1
      %p76 = por %p74, %p75
      %p77 = scmp.ne.s32.totalorder %s69, %s72
      %p78 = scmp.eq.s32.totalorder %s17, 0
      %p79 = por %p77, %p78
      %p80 = scmp.ne.s32.totalorder %s69, %s72
      %p81 = scmp.eq.s32.totalorder %s22, 1
      %p82 = por %p80, %p81
      %p83 = scmp.ne.s32.totalorder %s72, %s73
      %p84 = scmp.eq.s32.totalorder %s22, 0
      %p85 = por %p83, %p84
      %p86 = scmp.ne.s32.totalorder %s72, %s73
      %p87 = scmp.eq.s32.totalorder %s23, 1
      %p88 = por %p86, %p87
      %p90 = scmp.ne.s32.totalorder %s73, %s89
      %p91 = scmp.eq.s32.totalorder %s23, 0
      %p92 = por %p90, %p91
      %s93 = ssub.s32 %s24, %s36
      %p94 = scmp.eq.s32.totalorder %s93, 0
      %s96 = sadd.s32 %s95, 1
      %s97 = scalar_select %p94, %s95, %s96
      %p100 = pneg %p94
      %p101 = scmp.eq.s32.totalorder %s17, 1
      %p102 = por %p100, %p101
      %p103 = scmp.ne.s32.totalorder %s95, %s98
      %p104 = scmp.eq.s32.totalorder %s17, 0
      %p105 = por %p103, %p104
      %p106 = scmp.ne.s32.totalorder %s95, %s98
      %p107 = scmp.eq.s32.totalorder %s22, 1
      %p108 = por %p106, %p107
      %p109 = scmp.ne.s32.totalorder %s98, %s99
      %p110 = scmp.eq.s32.totalorder %s22, 0
      %p111 = por %p109, %p110
      %p112 = scmp.ne.s32.totalorder %s98, %s99
      %p113 = scmp.eq.s32.totalorder %s23, 1
      %p114 = por %p112, %p113
      %p116 = scmp.ne.s32.totalorder %s99, %s115
      %p117 = scmp.eq.s32.totalorder %s23, 0
      %p118 = por %p116, %p117
      %p119 = scmp.le.s32.totalorder 1, %s17
      %p120 = scmp.lt.s32.totalorder %s17, 3
      %p121 = pnand %p119, %p120
      %p122 = pneg %p121
      // Predicated region
      $region9: #{tpu_custom_call.1} parent=5 // pred_check
        _
      $region10: #{tpu_custom_call.1} parent=5 // pred_check_branch
        %124 = sbr.rel (%p121) target = $region12
      $region11: #{tpu_custom_call.1} parent=5 // pred_region
        %s125 = ssub.s32 %s17, 1
      $region12: #{tpu_custom_call.1} parent=5 // pred_fallthru
        _
      %p126 = scmp.lt.s32.totalorder %s17, 2
      // Predicated region
      $region13: #{tpu_custom_call.1} parent=5 // pred_check
        %p127 = pneg %p126
      $region14: #{tpu_custom_call.1} parent=5 // pred_check_branch
        %129 = sbr.rel (%p127) target = $region16
      $region15: #{tpu_custom_call.1} parent=5 // pred_region
        // Predicated region
        $region17: #{tpu_custom_call.1} parent=15 // pred_check
          %p130 = pneg %p51
        $region18: #{tpu_custom_call.1} parent=15 // pred_check_branch
          %132 = sbr.rel (%p130) target = $region20
        $region19: #{tpu_custom_call.1} parent=15 // pred_region
          %s133 = sand.u32 %s41, 1
          %s134 = scalar_lea.sflag [#allocation6], %s133
          %s135 = sand.u32 %s41, 1
          %s136 = smul.addr %s135, 64
          %s137 = scalar_lea.vmem [#allocation5], %s136
          %s138 = sadd.s32 %s24, %s25
          %s139 = smul.u32 2, %s138
          %141 = vsyncadd %s134, 0
          %s142 = smul.addr %s139, 4
          %s143 = smul.addr %s142, 8
          %s144 = scalar_lea.hbm %s0, %s143
          %s145 = sshll.u32 %s144, 4
          %s146 = int_to_ptr.hbm [resolvable:$true] %s145
          %s147 = sshll.u32 %s137, 4
          %s148 = int_to_ptr.vmem [resolvable:$true] %s147
          %153 = dma.hbm_to_vmem [thread:$0]  %s146, 1024, %s148, %s134, 512, 512, 32
        $region20: #{tpu_custom_call.1} parent=15 // pred_fallthru
          _
        // Predicated region
        $region21: #{tpu_custom_call.1} parent=15 // pred_check
          %p154 = pneg %p79
        $region22: #{tpu_custom_call.1} parent=15 // pred_check_branch
          %156 = sbr.rel (%p154) target = $region24
        $region23: #{tpu_custom_call.1} parent=15 // pred_region
          %s157 = sand.u32 %s69, 1
          %s158 = scalar_lea.sflag [#allocation9], %s157
          %s159 = sand.u32 %s69, 1
          %s160 = smul.addr %s159, 64
          %s161 = scalar_lea.vmem [#allocation8], %s160
          %s162 = sadd.s32 %s24, %s25
          %s163 = smul.u32 2, %s162
          %165 = vsyncadd %s158, 0
          %s166 = smul.addr %s163, 4
          %s167 = smul.addr %s166, 8
          %s168 = scalar_lea.hbm %s1, %s167
          %s169 = sshll.u32 %s168, 4
          %s170 = int_to_ptr.hbm [resolvable:$true] %s169
          %s171 = sshll.u32 %s161, 4
          %s172 = int_to_ptr.vmem [resolvable:$true] %s171
          %177 = dma.hbm_to_vmem [thread:$0]  %s170, 1024, %s172, %s158, 512, 512, 32
        $region24: #{tpu_custom_call.1} parent=15 // pred_fallthru
          _
      $region16: #{tpu_custom_call.1} parent=5 // pred_fallthru
        _
      %p178 = scmp.le.s32.totalorder 1, %s17
      %p179 = scmp.lt.s32.totalorder %s17, 3
      %p180 = pnand %p178, %p179
      %p181 = pneg %p180
      // Predicated region
      $region25: #{tpu_custom_call.1} parent=5 // pred_check
        _
      $region26: #{tpu_custom_call.1} parent=5 // pred_check_branch
        %183 = sbr.rel (%p180) target = $region28
      $region27: #{tpu_custom_call.1} parent=5 // pred_region
        %s184 = ssub.s32 %s17, 1
        %s185 = sand.u32 %s44, 1
        %s186 = scalar_lea.sflag [#allocation6], %s185
        %s187 = sand.u32 %s44, 1
        %s188 = smul.addr %s187, 64
        %s189 = scalar_lea.vmem [#allocation5], %s188
        // Predicated region
        $region29: #{tpu_custom_call.1} parent=27 // pred_check
          %p190 = pneg %p57
        $region30: #{tpu_custom_call.1} parent=27 // pred_check_branch
          %192 = sbr.rel (%p190) target = $region32
        $region31: #{tpu_custom_call.1} parent=27 // pred_region
          %194 = dma.done %s186, 1024
        $region32: #{tpu_custom_call.1} parent=27 // pred_fallthru
          _
        %s195 = sand.u32 %s72, 1
        %s196 = scalar_lea.sflag [#allocation9], %s195
        %s197 = sand.u32 %s72, 1
        %s198 = smul.addr %s197, 64
        %s199 = scalar_lea.vmem [#allocation8], %s198
        // Predicated region
        $region33: #{tpu_custom_call.1} parent=27 // pred_check
          %p200 = pneg %p85
        $region34: #{tpu_custom_call.1} parent=27 // pred_check_branch
          %202 = sbr.rel (%p200) target = $region36
        $region35: #{tpu_custom_call.1} parent=27 // pred_region
          %204 = dma.done %s196, 1024
        $region36: #{tpu_custom_call.1} parent=27 // pred_fallthru
          _
        %s205 = sand.u32 %s44, 1
        %s206 = scalar_lea.sflag [#allocation6], %s205
        %s207 = sand.u32 %s44, 1
        %s208 = smul.addr %s207, 64
        %s209 = scalar_lea.vmem [#allocation5], %s208
        %p210 = pneg %p57
        %p211 = pneg %p54
        %s212 = sand.u32 %s72, 1
        %s213 = scalar_lea.sflag [#allocation9], %s212
        %s214 = sand.u32 %s72, 1
        %s215 = smul.addr %s214, 64
        %s216 = scalar_lea.vmem [#allocation8], %s215
        %p217 = pneg %p85
        %p218 = pneg %p82
        %p219 = pneg %p111
        %p220 = pneg %p108
        %s221 = sand.u32 %s98, 1
        %s222 = scalar_lea.sflag [#allocation7], %s221
        %s223 = sand.u32 %s98, 1
        %s224 = smul.addr %s223, 8
        %s225 = scalar_lea.vmem [#allocation10], %s224
        %s226 = sadd.s32 %s26, %s27
        %s227 = smul.u32 2, %s226
        %s228 = sadd.s32 %s26, %s27
        %s229 = smul.u32 2, %s228
        %p230 = scmp.eq.s32.totalorder %s27, 0
        // Predicated region
        $region37: #{tpu_custom_call.1} parent=27 // pred_check
          %p231 = pneg %p230
        $region38: #{tpu_custom_call.1} parent=27 // pred_check_branch
          %233 = sbr.rel (%p231) target = $region40
        $region39: #{tpu_custom_call.1} parent=27 // pred_region
          %234 = vst [vmem:[#allocation2] sm:$0xff] 0.0
          %235 = vst [vmem:[#allocation2 + $0x8] sm:$0xff] 0.0
          %236 = vst [vmem:[#allocation2 + $0x10] sm:$0xff] 0.0
          %237 = vst [vmem:[#allocation2 + $0x18] sm:$0xff] 0.0
          %238 = vst [vmem:[#allocation3] sm:$0xff] 0.0
          %239 = vst [vmem:[#allocation3 + $0x8] sm:$0xff] 0.0
          %240 = vst [vmem:[#allocation3 + $0x10] sm:$0xff] 0.0
          %241 = vst [vmem:[#allocation3 + $0x18] sm:$0xff] 0.0
          %242 = vst [vmem:[#allocation4] sm:$0xff] 0.0
          %243 = vst [vmem:[#allocation4 + $0x8] sm:$0xff] 0.0
          %244 = vst [vmem:[#allocation4 + $0x10] sm:$0xff] 0.0
          %245 = vst [vmem:[#allocation4 + $0x18] sm:$0xff] 0.0
        $region40: #{tpu_custom_call.1} parent=27 // pred_fallthru
          _
        %v246 = vld [vmem:[%s189] sm:$0xff]
        %v247 = vld [vmem:[%s189 + $0x8] sm:$0xff]
        %v248 = vld [vmem:[%s189 + $0x10] sm:$0xff]
        %v249 = vld [vmem:[%s189 + $0x18] sm:$0xff]
        %v250 = vld [vmem:[%s189 + $0x20] sm:$0xff]
        %v251 = vld [vmem:[%s189 + $0x28] sm:$0xff]
        %v252 = vld [vmem:[%s189 + $0x30] sm:$0xff]
        %v253 = vld [vmem:[%s189 + $0x38] sm:$0xff]
        %v254 = vld [vmem:[%s199] sm:$0xff]
        %v255 = vld [vmem:[%s199 + $0x8] sm:$0xff]
        %v256 = vld [vmem:[%s199 + $0x10] sm:$0xff]
        %v257 = vld [vmem:[%s199 + $0x18] sm:$0xff]
        %v258 = vld [vmem:[%s199 + $0x20] sm:$0xff]
        %v259 = vld [vmem:[%s199 + $0x28] sm:$0xff]
        %v260 = vld [vmem:[%s199 + $0x30] sm:$0xff]
        %v261 = vld [vmem:[%s199 + $0x38] sm:$0xff]
        %v262 = vld [vmem:[#allocation2] sm:$0xff]
        %v263 = vld [vmem:[#allocation2 + $0x8] sm:$0xff]
        %v264 = vld [vmem:[#allocation2 + $0x10] sm:$0xff]
        %v265 = vld [vmem:[#allocation2 + $0x18] sm:$0xff]
        %v266 = vmul.f32 %v246, %v246
        %v267 = vmul.f32 %v247, %v247
        %v268 = vmul.f32 %v248, %v248
        %v269 = vmul.f32 %v249, %v249
        %v270 = vmul.f32 %v250, %v250
        %v271 = vmul.f32 %v251, %v251
        %v272 = vmul.f32 %v252, %v252
        %v273 = vmul.f32 %v253, %v253
        %v274 = vadd.f32 %v266, %v270
        %v275 = vadd.f32 %v267, %v271
        %v276 = vadd.f32 %v268, %v272
        %v277 = vadd.f32 %v269, %v273
        %v278 = vadd.f32 %v262, %v274
        %v279 = vadd.f32 %v263, %v275
        %v280 = vadd.f32 %v264, %v276
        %v281 = vadd.f32 %v265, %v277
        %282 = vst [vmem:[#allocation2] sm:$0xff] %v278
        %283 = vst [vmem:[#allocation2 + $0x8] sm:$0xff] %v279
        %284 = vst [vmem:[#allocation2 + $0x10] sm:$0xff] %v280
        %285 = vst [vmem:[#allocation2 + $0x18] sm:$0xff] %v281
        %v286 = vld [vmem:[#allocation3] sm:$0xff]
        %v287 = vld [vmem:[#allocation3 + $0x8] sm:$0xff]
        %v288 = vld [vmem:[#allocation3 + $0x10] sm:$0xff]
        %v289 = vld [vmem:[#allocation3 + $0x18] sm:$0xff]
        %v290 = vmul.f32 %v254, %v254
        %v291 = vmul.f32 %v255, %v255
        %v292 = vmul.f32 %v256, %v256
        %v293 = vmul.f32 %v257, %v257
        %v294 = vmul.f32 %v258, %v258
        %v295 = vmul.f32 %v259, %v259
        %v296 = vmul.f32 %v260, %v260
        %v297 = vmul.f32 %v261, %v261
        %v298 = vadd.f32 %v290, %v294
        %v299 = vadd.f32 %v291, %v295
        %v300 = vadd.f32 %v292, %v296
        %v301 = vadd.f32 %v293, %v297
        %v302 = vadd.f32 %v286, %v298
        %v303 = vadd.f32 %v287, %v299
        %v304 = vadd.f32 %v288, %v300
        %v305 = vadd.f32 %v289, %v301
        %306 = vst [vmem:[#allocation3] sm:$0xff] %v302
        %307 = vst [vmem:[#allocation3 + $0x8] sm:$0xff] %v303
        %308 = vst [vmem:[#allocation3 + $0x10] sm:$0xff] %v304
        %309 = vst [vmem:[#allocation3 + $0x18] sm:$0xff] %v305
        %v310 = vld [vmem:[#allocation4] sm:$0xff]
        %v311 = vld [vmem:[#allocation4 + $0x8] sm:$0xff]
        %v312 = vld [vmem:[#allocation4 + $0x10] sm:$0xff]
        %v313 = vld [vmem:[#allocation4 + $0x18] sm:$0xff]
        %v314 = vmul.f32 %v246, %v254
        %v315 = vmul.f32 %v247, %v255
        %v316 = vmul.f32 %v248, %v256
        %v317 = vmul.f32 %v249, %v257
        %v318 = vmul.f32 %v250, %v258
        %v319 = vmul.f32 %v251, %v259
        %v320 = vmul.f32 %v252, %v260
        %v321 = vmul.f32 %v253, %v261
        %v322 = vadd.f32 %v314, %v318
        %v323 = vadd.f32 %v315, %v319
        %v324 = vadd.f32 %v316, %v320
        %v325 = vadd.f32 %v317, %v321
        %v326 = vadd.f32 %v310, %v322
        %v327 = vadd.f32 %v311, %v323
        %v328 = vadd.f32 %v312, %v324
        %v329 = vadd.f32 %v313, %v325
        %330 = vst [vmem:[#allocation4] sm:$0xff] %v326
        %331 = vst [vmem:[#allocation4 + $0x8] sm:$0xff] %v327
        %332 = vst [vmem:[#allocation4 + $0x10] sm:$0xff] %v328
        %333 = vst [vmem:[#allocation4 + $0x18] sm:$0xff] %v329
        // Predicated region
        $region41: #{tpu_custom_call.1} parent=27 // pred_check
          %p334 = pneg %p230
        $region42: #{tpu_custom_call.1} parent=27 // pred_check_branch
          %336 = sbr.rel (%p334) target = $region44
        $region43: #{tpu_custom_call.1} parent=27 // pred_region
          %v337 = vld [vmem:[#allocation2] sm:$0xff]
          %v338 = vld [vmem:[#allocation2 + $0x8] sm:$0xff]
          %v339 = vld [vmem:[#allocation2 + $0x10] sm:$0xff]
          %v340 = vld [vmem:[#allocation2 + $0x18] sm:$0xff]
          %v341 = vadd.f32 %v337, %v338
          %v342 = vadd.f32 %v341, %v339
          %v343 = vadd.f32 %v342, %v340
          %344 = vadd.xlane.f32.xlu0 %v343
          %v345 = vpop.xlane.xlu0 %344
          %v346 = vrot.slane %v345, 4
          %v347 = vadd.f32 %v345, %v346
          %v348 = vrot.slane %v347, 2
          %v349 = vadd.f32 %v347, %v348
          %v350 = vrot.slane %v349, 1
          %v351 = vadd.f32 %v349, %v350
          %s352 = vtos %v351
          %v353 = vld [vmem:[#allocation3] sm:$0xff]
          %v354 = vld [vmem:[#allocation3 + $0x8] sm:$0xff]
          %v355 = vld [vmem:[#allocation3 + $0x10] sm:$0xff]
          %v356 = vld [vmem:[#allocation3 + $0x18] sm:$0xff]
          %v357 = vadd.f32 %v353, %v354
          %v358 = vadd.f32 %v357, %v355
          %v359 = vadd.f32 %v358, %v356
          %360 = vadd.xlane.f32.xlu0 %v359
          %v361 = vpop.xlane.xlu0 %360
          %v362 = vrot.slane %v361, 4
          %v363 = vadd.f32 %v361, %v362
          %v364 = vrot.slane %v363, 2
          %v365 = vadd.f32 %v363, %v364
          %v366 = vrot.slane %v365, 1
          %v367 = vadd.f32 %v365, %v366
          %s368 = vtos %v367
          %v369 = vld [vmem:[#allocation4] sm:$0xff]
          %v370 = vld [vmem:[#allocation4 + $0x8] sm:$0xff]
          %v371 = vld [vmem:[#allocation4 + $0x10] sm:$0xff]
          %v372 = vld [vmem:[#allocation4 + $0x18] sm:$0xff]
          %v373 = vadd.f32 %v369, %v370
          %v374 = vadd.f32 %v373, %v371
          %v375 = vadd.f32 %v374, %v372
          %376 = vadd.xlane.f32.xlu0 %v375
          %v377 = vpop.xlane.xlu0 %376
          %v378 = vrot.slane %v377, 4
          %v379 = vadd.f32 %v377, %v378
          %v380 = vrot.slane %v379, 2
          %v381 = vadd.f32 %v379, %v380
          %v382 = vrot.slane %v381, 1
          %v383 = vadd.f32 %v381, %v382
          %s384 = vtos %v383
          %v385 = vlaneseq
          %v386 = vand.u32 %v385, 127
          %vm387 = vcmp.eq.s32.totalorder %v386, 0
          %vm388 = vcmp.eq.s32.totalorder %v386, 1
          %vm389 = vcmp.eq.s32.totalorder %v386, 2
          %v390 = vstv %s384
          %v391 = vsel %vm389, %v390, 0.0
          %v392 = vstv %s368
          %v393 = vsel %vm388, %v392, %v391
          %v394 = vstv %s352
          %v395 = vsel %vm387, %v394, %v393
          %396 = vst [vmem:[%s225] sm:$0xff] %v395
        $region44: #{tpu_custom_call.1} parent=27 // pred_fallthru
          _
        %s397 = sand.u32 %s98, 1
        %s398 = scalar_lea.sflag [#allocation7], %s397
        %s399 = sand.u32 %s98, 1
        %s400 = smul.addr %s399, 8
        %s401 = scalar_lea.vmem [#allocation10], %s400
        // Predicated region
        $region45: #{tpu_custom_call.1} parent=27 // pred_check
          %p402 = pneg %p108
        $region46: #{tpu_custom_call.1} parent=27 // pred_check_branch
          %404 = sbr.rel (%p402) target = $region48
        $region47: #{tpu_custom_call.1} parent=27 // pred_region
          %406 = vsyncadd %s398, 0
          %s407 = smul.addr %s26, 8
          %s408 = scalar_lea.hbm %s2, %s407
          %s410 = sshll.u32 %s401, 4
          %s411 = int_to_ptr.vmem [resolvable:$true] %s410
          %s412 = sshll.u32 %s408, 4
          %s413 = int_to_ptr.hbm [resolvable:$true] %s412
          %415 = dma.vmem_to_hbm [thread:$0]  %s411, 128, %s413, %s398
        $region48: #{tpu_custom_call.1} parent=27 // pred_fallthru
          _
      $region28: #{tpu_custom_call.1} parent=5 // pred_fallthru
        _
      %p416 = scmp.le.s32.totalorder 2, %s17
      // Predicated region
      $region49: #{tpu_custom_call.1} parent=5 // pred_check
        %p417 = pneg %p416
      $region50: #{tpu_custom_call.1} parent=5 // pred_check_branch
        %419 = sbr.rel (%p417) target = $region52
      $region51: #{tpu_custom_call.1} parent=5 // pred_region
        %s420 = ssub.s32 %s17, 2
        // Predicated region
        $region53: #{tpu_custom_call.1} parent=51 // pred_check
          %p421 = pneg %p114
        $region54: #{tpu_custom_call.1} parent=51 // pred_check_branch
          %423 = sbr.rel (%p421) target = $region56
        $region55: #{tpu_custom_call.1} parent=51 // pred_region
          %s424 = sand.u32 %s99, 1
          %s425 = scalar_lea.sflag [#allocation7], %s424
          %s426 = sand.u32 %s99, 1
          %s427 = smul.addr %s426, 8
          %s428 = scalar_lea.vmem [#allocation10], %s427
          %430 = dma.done %s425, 128
        $region56: #{tpu_custom_call.1} parent=51 // pred_fallthru
          _
      $region52: #{tpu_custom_call.1} parent=5 // pred_fallthru
        _
    $region6: #{tpu_custom_call.1} parent=1 // loop_footer
      %s21 = sadd.s32 1, %s17
    $region7: #{tpu_custom_call.1} parent=1 // loop_footer_branch
      %16 = sbr.rel target = $region3
    $region8: #{tpu_custom_call.1} parent=1 // loop_exit
      _
    %431 = vsyncpa [#allocation6], 1
    %s432 = scalar_lea.sflag [#allocation6], 1
    %433 = vsyncpa %s432, 1
    %434 = vsyncpa [#allocation9], 1
    %s435 = scalar_lea.sflag [#allocation9], 1
    %436 = vsyncpa %s435, 1
    %437 = vsyncpa [#allocation7], 1
    %s438 = scalar_lea.sflag [#allocation7], 1
    %439 = vsyncpa %s438, 1

</llo_original>
